<compile_context>
chip_gen: v6e
topology: v6e:2x2x1
jax: 0.10.0
libtpu: 0.0.40
codegen_flags: <defaults>
</compile_context>

<pallas_src>
import jax
import jax.numpy as jnp
from jax.experimental import pallas as pl
from jax.experimental.pallas import tpu as pltpu


# ------------------------- config (synthetic) -------------------------------
Z_SIZE = 32
G_H1_SIZE = 64
G_H2_SIZE = 128
X_SIZE = 256
LEAKY_SLOPE = 0.2

BATCH = 256          # small example batch (2 grid steps at TILE_B=128)
TILE_B = 128         # batch rows per grid step


# ------------------------------ kernel --------------------------------------
def generator_kernel(x_ref, w1_ref, b1_ref, w2_ref, b2_ref, w3_ref, b3_ref,
                     out_ref):
    slope = jnp.float32(LEAKY_SLOPE)

    # Matmul inputs in bf16 (MXU fast path), accumulate in f32.
    x = x_ref[...].astype(jnp.bfloat16)                              # (TB, z)

    # Linear 1 + LeakyReLU (f32 elementwise).  0 < slope < 1, so
    # leaky_relu(h) == max(h, slope*h): one VALU op.
    h1 = jnp.dot(x, w1_ref[...], preferred_element_type=jnp.float32)
    h1 = h1 + b1_ref[...]                                            # (TB, h1) + (1, h1)
    h1 = jnp.maximum(h1, slope * h1)

    # Linear 2 + LeakyReLU
    h2 = jnp.dot(h1.astype(jnp.bfloat16), w2_ref[...],
                 preferred_element_type=jnp.float32)
    h2 = h2 + b2_ref[...]
    h2 = jnp.maximum(h2, slope * h2)

    # Linear 3 + Tanh (tanh -> EUP, separate issue slot)
    y = jnp.dot(h2.astype(jnp.bfloat16), w3_ref[...],
                preferred_element_type=jnp.float32)
    y = y + b3_ref[...]
    out_ref[...] = jnp.tanh(y).astype(out_ref.dtype)


# ------------------------------ wrapper --------------------------------------
def generator_forward(x, params, tile_b=TILE_B):
    w1, b1, w2, b2, w3, b3 = params
    B = x.shape[0]

    # Batch tile: multiple of 8 (sublane), capped at tile_b; avoids padding a
    # tiny batch all the way up to 128.
    tb = min(tile_b, max(8, ((B + 7) // 8) * 8))
    n_tiles = pl.cdiv(B, tb)
    B_pad = n_tiles * tb
    if B_pad != B:
        x = jnp.pad(x, ((0, B_pad - B), (0, 0)))

    # Batch-tiled activation specs; weights/biases resident across grid steps.
    resident = lambda arr: pl.BlockSpec(arr.shape, lambda i: (0, 0))

    flops = 2 * B_pad * (Z_SIZE * G_H1_SIZE + G_H1_SIZE * G_H2_SIZE
                         + G_H2_SIZE * X_SIZE)
    bytes_accessed = (
        B_pad * Z_SIZE * 4                                   # x (f32)
        + (Z_SIZE * G_H1_SIZE + G_H1_SIZE * G_H2_SIZE
           + G_H2_SIZE * X_SIZE) * 2                         # bf16 weights
        + (G_H1_SIZE + G_H2_SIZE + X_SIZE) * 4               # f32 biases
        + B_pad * X_SIZE * 4                                 # output (f32)
    )
    cost = pl.CostEstimate(flops=flops,
                           transcendentals=B_pad * X_SIZE,   # tanh
                           bytes_accessed=bytes_accessed)

    out = pl.pallas_call(
        generator_kernel,
        out_shape=jax.ShapeDtypeStruct((B_pad, X_SIZE), jnp.float32),
        grid_spec=pltpu.PrefetchScalarGridSpec(
            num_scalar_prefetch=0,
            grid=(n_tiles,),
            in_specs=[
                pl.BlockSpec((tb, Z_SIZE), lambda i: (i, 0)),
                resident(w1), resident(b1),
                resident(w2), resident(b2),
                resident(w3), resident(b3),
            ],
            out_specs=pl.BlockSpec((tb, X_SIZE), lambda i: (i, 0)),
        ),
        compiler_params=pltpu.CompilerParams(
            dimension_semantics=("parallel",)),   # megacore on v7x; no-op elsewhere
        cost_estimate=cost,
    )(x, w1, b1, w2, b2, w3, b3)

    return out[:B] if B_pad != B else out


# -------------------------- parameter init -----------------------------------
def init_params(key):
    """Deterministic init mimicking nn.Linear default (uniform +/- 1/sqrt(fan_in)).

    Weights stored as (in_features, out_features), bf16 for the MXU fast path.
    Biases kept in f32 (bias add / activations run in f32).
    """
    def linear(key, fan_in, fan_out):
        kw, kb = jax.random.split(key)
        bound = 1.0 / jnp.sqrt(jnp.float32(fan_in))
        w = jax.random.uniform(kw, (fan_in, fan_out), jnp.float32, -bound, bound)
        b = jax.random.uniform(kb, (1, fan_out), jnp.float32, -bound, bound)
        return w.astype(jnp.bfloat16), b

    k1, k2, k3 = jax.random.split(key, 3)
    w1, b1 = linear(k1, Z_SIZE, G_H1_SIZE)
    w2, b2 = linear(k2, G_H1_SIZE, G_H2_SIZE)
    w3, b3 = linear(k3, G_H2_SIZE, X_SIZE)
    return (w1, b1, w2, b2, w3, b3)


# ------------------------- pure-JAX reference --------------------------------
def generator_ref(x, params):
    """f32 reference with the same (bf16-stored) weights."""
    w1, b1, w2, b2, w3, b3 = params
    w1, w2, w3 = (w.astype(jnp.float32) for w in (w1, w2, w3))
    h1 = x @ w1 + b1
    h1 = jnp.where(h1 >= 0, h1, LEAKY_SLOPE * h1)
    h2 = h1 @ w2 + b2
    h2 = jnp.where(h2 >= 0, h2, LEAKY_SLOPE * h2)
    return jnp.tanh(h2 @ w3 + b3)


# ------------------------------- main -----------------------------------------
if __name__ == "__main__":
    key = jax.random.PRNGKey(0)
    kx, kp = jax.random.split(key)

    x = jax.random.normal(kx, (BATCH, Z_SIZE), dtype=jnp.float32)  # latent z
    params = init_params(kp)

    out = generator_forward(x, params)
    out = jax.block_until_ready(out)

    ref = generator_ref(x, params)
    assert out.shape == (BATCH, X_SIZE)
    # bf16 matmul inputs (f32 accumulation) -> slightly looser tolerance vs f32 ref.
    max_err = float(jnp.max(jnp.abs(out - ref)))
    assert max_err < 5e-2, f"mismatch vs reference (max abs err {max_err})"

    print("KERNEL_OK")
</pallas_src>

<mosaic_0001>
module attributes {stable_mosaic.version = 11 : i64} {
  func.func @generator_kernel(%arg0: i32, %arg1: memref<128x32xf32, #tpu.memory_space<vmem>>, %arg2: memref<32x64xbf16, #tpu.memory_space<vmem>>, %arg3: memref<1x64xf32, #tpu.memory_space<vmem>>, %arg4: memref<64x128xbf16, #tpu.memory_space<vmem>>, %arg5: memref<1x128xf32, #tpu.memory_space<vmem>>, %arg6: memref<128x256xbf16, #tpu.memory_space<vmem>>, %arg7: memref<1x256xf32, #tpu.memory_space<vmem>>, %arg8: memref<128x256xf32, #tpu.memory_space<vmem>>) attributes {dimension_semantics = [#tpu.dimension_semantics<parallel>], iteration_bounds = array<i64: 2>, scalar_prefetch = 0 : i64, scratch_operands = 0 : i64, tpu.core_type = #tpu.core_type<tc>, window_params = [{transform_indices = @transform_0, window_bounds = array<i64: 128, 32>}, {pipeline_mode = #tpu.pipeline_mode<synchronous>, transform_indices = @transform_1, window_bounds = array<i64: 32, 64>}, {pipeline_mode = #tpu.pipeline_mode<synchronous>, transform_indices = @transform_2, window_bounds = array<i64: 1, 64>}, {pipeline_mode = #tpu.pipeline_mode<synchronous>, transform_indices = @transform_3, window_bounds = array<i64: 64, 128>}, {pipeline_mode = #tpu.pipeline_mode<synchronous>, transform_indices = @transform_4, window_bounds = array<i64: 1, 128>}, {pipeline_mode = #tpu.pipeline_mode<synchronous>, transform_indices = @transform_5, window_bounds = array<i64: 128, 256>}, {pipeline_mode = #tpu.pipeline_mode<synchronous>, transform_indices = @transform_6, window_bounds = array<i64: 1, 256>}, {transform_indices = @transform_7, window_bounds = array<i64: 128, 256>}]} {
    %c0 = arith.constant 0 : index
    %c0_0 = arith.constant 0 : index
    %0 = vector.load %arg1[%c0, %c0_0] : memref<128x32xf32, #tpu.memory_space<vmem>>, vector<128x32xf32>
    %1 = arith.truncf %0 : vector<128x32xf32> to vector<128x32xbf16>
    %c0_1 = arith.constant 0 : index
    %c0_2 = arith.constant 0 : index
    %2 = vector.load %arg2[%c0_1, %c0_2] : memref<32x64xbf16, #tpu.memory_space<vmem>>, vector<32x64xbf16>
    %cst = arith.constant dense<0.000000e+00> : vector<128x64xf32>
    %3 = tpu.matmul %1, %2, %cst {dimension_numbers = #tpu.dot_dimension_numbers<[1], [0], [0], [1], [0, 0, 1, 1], [], []>} : vector<128x32xbf16>, vector<32x64xbf16>, vector<128x64xf32> -> vector<128x64xf32>
    %c0_3 = arith.constant 0 : index
    %c0_4 = arith.constant 0 : index
    %4 = vector.load %arg3[%c0_3, %c0_4] : memref<1x64xf32, #tpu.memory_space<vmem>>, vector<1x64xf32>
    %5 = vector.broadcast %4 : vector<1x64xf32> to vector<128x64xf32>
    %6 = arith.addf %3, %5 : vector<128x64xf32>
    %cst_5 = arith.constant 2.000000e-01 : f32
    %7 = vector.broadcast %cst_5 : f32 to vector<128x64xf32>
    %8 = arith.mulf %7, %6 : vector<128x64xf32>
    %9 = arith.maximumf %6, %8 : vector<128x64xf32>
    %10 = arith.truncf %9 : vector<128x64xf32> to vector<128x64xbf16>
    %c0_6 = arith.constant 0 : index
    %c0_7 = arith.constant 0 : index
    %11 = vector.load %arg4[%c0_6, %c0_7] : memref<64x128xbf16, #tpu.memory_space<vmem>>, vector<64x128xbf16>
    %cst_8 = arith.constant dense<0.000000e+00> : vector<128x128xf32>
    %12 = tpu.matmul %10, %11, %cst_8 {dimension_numbers = #tpu.dot_dimension_numbers<[1], [0], [0], [1], [0, 0, 1, 1], [], []>} : vector<128x64xbf16>, vector<64x128xbf16>, vector<128x128xf32> -> vector<128x128xf32>
    %c0_9 = arith.constant 0 : index
    %c0_10 = arith.constant 0 : index
    %13 = vector.load %arg5[%c0_9, %c0_10] : memref<1x128xf32, #tpu.memory_space<vmem>>, vector<1x128xf32>
    %14 = vector.broadcast %13 : vector<1x128xf32> to vector<128x128xf32>
    %15 = arith.addf %12, %14 : vector<128x128xf32>
    %cst_11 = arith.constant 2.000000e-01 : f32
    %16 = vector.broadcast %cst_11 : f32 to vector<128x128xf32>
    %17 = arith.mulf %16, %15 : vector<128x128xf32>
    %18 = arith.maximumf %15, %17 : vector<128x128xf32>
    %19 = arith.truncf %18 : vector<128x128xf32> to vector<128x128xbf16>
    %c0_12 = arith.constant 0 : index
    %c0_13 = arith.constant 0 : index
    %20 = vector.load %arg6[%c0_12, %c0_13] : memref<128x256xbf16, #tpu.memory_space<vmem>>, vector<128x256xbf16>
    %cst_14 = arith.constant dense<0.000000e+00> : vector<128x256xf32>
    %21 = tpu.matmul %19, %20, %cst_14 {dimension_numbers = #tpu.dot_dimension_numbers<[1], [0], [0], [1], [0, 0, 1, 1], [], []>} : vector<128x128xbf16>, vector<128x256xbf16>, vector<128x256xf32> -> vector<128x256xf32>
    %c0_15 = arith.constant 0 : index
    %c0_16 = arith.constant 0 : index
    %22 = vector.load %arg7[%c0_15, %c0_16] : memref<1x256xf32, #tpu.memory_space<vmem>>, vector<1x256xf32>
    %23 = vector.broadcast %22 : vector<1x256xf32> to vector<128x256xf32>
    %24 = arith.addf %21, %23 : vector<128x256xf32>
    %25 = math.tanh %24 : vector<128x256xf32>
    %c0_17 = arith.constant 0 : index
    %c0_18 = arith.constant 0 : index
    %26 = vector.load %arg8[%c0_17, %c0_18] : memref<128x256xf32, #tpu.memory_space<vmem>>, vector<128x256xf32>
    tpu.vector_store %arg8[%c0_17, %c0_18], %25 {strides = array<i32>} : memref<128x256xf32, #tpu.memory_space<vmem>>, vector<128x256xf32>,
    return
  }
  func.func @transform_0(%arg0: i32) -> (i32, i32) {
    %c0_i32 = arith.constant 0 : i32
    %c0_i32_0 = arith.constant 0 : i32
    return %arg0, %c0_i32 : i32, i32
  }
  func.func @transform_1(%arg0: i32) -> (i32, i32) {
    %c0_i32 = arith.constant 0 : i32
    %c0_i32_0 = arith.constant 0 : i32
    %c0_i32_1 = arith.constant 0 : i32
    return %c0_i32, %c0_i32_0 : i32, i32
  }
  func.func @transform_2(%arg0: i32) -> (i32, i32) {
    %c0_i32 = arith.constant 0 : i32
    %c0_i32_0 = arith.constant 0 : i32
    %c0_i32_1 = arith.constant 0 : i32
    return %c0_i32, %c0_i32_0 : i32, i32
  }
  func.func @transform_3(%arg0: i32) -> (i32, i32) {
    %c0_i32 = arith.constant 0 : i32
    %c0_i32_0 = arith.constant 0 : i32
    %c0_i32_1 = arith.constant 0 : i32
    return %c0_i32, %c0_i32_0 : i32, i32
  }
  func.func @transform_4(%arg0: i32) -> (i32, i32) {
    %c0_i32 = arith.constant 0 : i32
    %c0_i32_0 = arith.constant 0 : i32
    %c0_i32_1 = arith.constant 0 : i32
    return %c0_i32, %c0_i32_0 : i32, i32
  }
  func.func @transform_5(%arg0: i32) -> (i32, i32) {
    %c0_i32 = arith.constant 0 : i32
    %c0_i32_0 = arith.constant 0 : i32
    %c0_i32_1 = arith.constant 0 : i32
    return %c0_i32, %c0_i32_0 : i32, i32
  }
  func.func @transform_6(%arg0: i32) -> (i32, i32) {
    %c0_i32 = arith.constant 0 : i32
    %c0_i32_0 = arith.constant 0 : i32
    %c0_i32_1 = arith.constant 0 : i32
    return %c0_i32, %c0_i32_0 : i32, i32
  }
  func.func @transform_7(%arg0: i32) -> (i32, i32) {
    %c0_i32 = arith.constant 0 : i32
    %c0_i32_0 = arith.constant 0 : i32
    return %arg0, %c0_i32 : i32, i32
  }
}

</mosaic_0001>

<llo_original>
// kernel: tpu_custom_call.1
$region0: #{tpu_custom_call.1}
  #allocation0 [shape = 'u32[]', space=smem, size = 0x4, offset = 0x4, fixed_abs, tag = 'smem constant byte address 0x4 - core index']
  #allocation1 [shape = 'u32[144,128]{1,0:T(1,128)}', space=vmem, size = 0x12000, scoped, tag = 'internal scratch']
  %s0 = inlined_call_operand.vmem [shape: f32[256,32], index: 0, kind: input, shape index: {}]
  %s1 = inlined_call_operand.vmem [shape: bf16[32,64], index: 1, kind: input, shape index: {}]
  %s2 = inlined_call_operand.vmem [shape: f32[1,64], index: 2, kind: input, shape index: {}]
  %s3 = inlined_call_operand.vmem [shape: bf16[64,128], index: 3, kind: input, shape index: {}]
  %s4 = inlined_call_operand.vmem [shape: f32[1,128], index: 4, kind: input, shape index: {}]
  %s5 = inlined_call_operand.vmem [shape: bf16[128,256], index: 5, kind: input, shape index: {}]
  %s6 = inlined_call_operand.vmem [shape: f32[1,256], index: 6, kind: input, shape index: {}]
  %s7 = inlined_call_operand.hbm [shape: f32[256,256], index: 7, kind: output, shape index: {}]
  %s8 = sld [smem:[#allocation0]]
  $region61: #{tpu_custom_call.1} parent=0
    _
  %s10 = ssub.s32 1, %s8
  %s11 = scalar_select 0, %s10, %s8
  $region1: #{tpu_custom_call.1} parent=0
    #allocation2 [shape = 'u8[262144]{0}', space=vmem, size = 0x40000, scoped, tag = 'output window, operand 0']
    #allocation3 [shape = 's32[2]{0}', space=sflag, size = 0x8, scoped, tag = 'scoped memory for tpu_custom_call.1']
    %12 = vsyncpa [#allocation3], 0
    %s13 = scalar_lea.sflag [#allocation3], 1
    %14 = vsyncpa %s13, 0
    loop: start=0, step=1, limit=4
    $region2: #{tpu_custom_call.1} parent=1 // loop_pre_header
      _
    $region3: #{tpu_custom_call.1} parent=1 // loop_header
      %s16 = sphi 0, %s20
      %p17 = scmp.ge.s32.totalorder %s16, 4
      %s26 = sphi 0, %s28
      %s29 = sphi 0, %s26
      %s30 = sphi 0, %s29
      %s46 = sphi 0, %s30
      %s50 = sphi 0, %s50
      %s52 = sphi 0, %s50
      %s53 = sphi 0, %s52
      %s67 = sphi 0, %s53
      %s71 = sphi 0, %s71
      %s73 = sphi 0, %s71
      %s74 = sphi 0, %s73
      %s88 = sphi 0, %s74
      %s92 = sphi 0, %s92
      %s94 = sphi 0, %s92
      %s95 = sphi 0, %s94
      %s109 = sphi 0, %s95
      %s113 = sphi 0, %s113
      %s115 = sphi 0, %s113
      %s116 = sphi 0, %s115
      %s130 = sphi 0, %s116
      %s134 = sphi 0, %s134
      %s136 = sphi 0, %s134
      %s137 = sphi 0, %s136
      %s151 = sphi 0, %s137
      %s155 = sphi 0, %s155
      %s157 = sphi 0, %s155
      %s158 = sphi 0, %s157
      %s172 = sphi 0, %s158
      %s178 = sphi 0, %s180
      %s181 = sphi 0, %s178
      %s182 = sphi 0, %s181
      %s198 = sphi 0, %s182
    $region4: #{tpu_custom_call.1} parent=1 // loop_header_branch
      %19 = sbr.rel (%p17) target = $region8
    $region5: #{tpu_custom_call.1} parent=1 // loop_body
      %s21 = ssub.s32 %s16, 1
      %s22 = ssub.s32 %s16, 2
      %s23 = sadd.s32 %s16, 1
      %s24 = ssub.s32 %s16, %s23
      %p25 = scmp.eq.s32.totalorder %s24, 0
      %s27 = sadd.s32 %s26, 1
      %s28 = scalar_select %p25, %s26, %s27
      %p31 = pneg %p25
      %p32 = scmp.eq.s32.totalorder %s16, 1
      %p33 = por %p31, %p32
      %p34 = scmp.ne.s32.totalorder %s26, %s29
      %p35 = scmp.eq.s32.totalorder %s16, 0
      %p36 = por %p34, %p35
      %p37 = scmp.ne.s32.totalorder %s26, %s29
      %p38 = scmp.eq.s32.totalorder %s21, 1
      %p39 = por %p37, %p38
      %p40 = scmp.ne.s32.totalorder %s29, %s30
      %p41 = scmp.eq.s32.totalorder %s21, 0
      %p42 = por %p40, %p41
      %p43 = scmp.ne.s32.totalorder %s29, %s30
      %p44 = scmp.eq.s32.totalorder %s22, 1
      %p45 = por %p43, %p44
      %p47 = scmp.ne.s32.totalorder %s30, %s46
      %p48 = scmp.eq.s32.totalorder %s22, 0
      %p49 = por %p47, %p48
      %s51 = sadd.s32 %s50, 1
      %p54 = scmp.eq.s32.totalorder %s16, 1
      %p55 = scmp.ne.s32.totalorder %s50, %s52
      %p56 = scmp.eq.s32.totalorder %s16, 0
      %p57 = por %p55, %p56
      %p58 = scmp.ne.s32.totalorder %s50, %s52
      %p59 = scmp.eq.s32.totalorder %s21, 1
      %p60 = por %p58, %p59
      %p61 = scmp.ne.s32.totalorder %s52, %s53
      %p62 = scmp.eq.s32.totalorder %s21, 0
      %p63 = por %p61, %p62
      %p64 = scmp.ne.s32.totalorder %s52, %s53
      %p65 = scmp.eq.s32.totalorder %s22, 1
      %p66 = por %p64, %p65
      %p68 = scmp.ne.s32.totalorder %s53, %s67
      %p69 = scmp.eq.s32.totalorder %s22, 0
      %p70 = por %p68, %p69
      %s72 = sadd.s32 %s71, 1
      %p75 = scmp.eq.s32.totalorder %s16, 1
      %p76 = scmp.ne.s32.totalorder %s71, %s73
      %p77 = scmp.eq.s32.totalorder %s16, 0
      %p78 = por %p76, %p77
      %p79 = scmp.ne.s32.totalorder %s71, %s73
      %p80 = scmp.eq.s32.totalorder %s21, 1
      %p81 = por %p79, %p80
      %p82 = scmp.ne.s32.totalorder %s73, %s74
      %p83 = scmp.eq.s32.totalorder %s21, 0
      %p84 = por %p82, %p83
      %p85 = scmp.ne.s32.totalorder %s73, %s74
      %p86 = scmp.eq.s32.totalorder %s22, 1
      %p87 = por %p85, %p86
      %p89 = scmp.ne.s32.totalorder %s74, %s88
      %p90 = scmp.eq.s32.totalorder %s22, 0
      %p91 = por %p89, %p90
      %s93 = sadd.s32 %s92, 1
      %p96 = scmp.eq.s32.totalorder %s16, 1
      %p97 = scmp.ne.s32.totalorder %s92, %s94
      %p98 = scmp.eq.s32.totalorder %s16, 0
      %p99 = por %p97, %p98
      %p100 = scmp.ne.s32.totalorder %s92, %s94
      %p101 = scmp.eq.s32.totalorder %s21, 1
      %p102 = por %p100, %p101
      %p103 = scmp.ne.s32.totalorder %s94, %s95
      %p104 = scmp.eq.s32.totalorder %s21, 0
      %p105 = por %p103, %p104
      %p106 = scmp.ne.s32.totalorder %s94, %s95
      %p107 = scmp.eq.s32.totalorder %s22, 1
      %p108 = por %p106, %p107
      %p110 = scmp.ne.s32.totalorder %s95, %s109
      %p111 = scmp.eq.s32.totalorder %s22, 0
      %p112 = por %p110, %p111
      %s114 = sadd.s32 %s113, 1
      %p117 = scmp.eq.s32.totalorder %s16, 1
      %p118 = scmp.ne.s32.totalorder %s113, %s115
      %p119 = scmp.eq.s32.totalorder %s16, 0
      %p120 = por %p118, %p119
      %p121 = scmp.ne.s32.totalorder %s113, %s115
      %p122 = scmp.eq.s32.totalorder %s21, 1
      %p123 = por %p121, %p122
      %p124 = scmp.ne.s32.totalorder %s115, %s116
      %p125 = scmp.eq.s32.totalorder %s21, 0
      %p126 = por %p124, %p125
      %p127 = scmp.ne.s32.totalorder %s115, %s116
      %p128 = scmp.eq.s32.totalorder %s22, 1
      %p129 = por %p127, %p128
      %p131 = scmp.ne.s32.totalorder %s116, %s130
      %p132 = scmp.eq.s32.totalorder %s22, 0
      %p133 = por %p131, %p132
      %s135 = sadd.s32 %s134, 1
      %p138 = scmp.eq.s32.totalorder %s16, 1
      %p139 = scmp.ne.s32.totalorder %s134, %s136
      %p140 = scmp.eq.s32.totalorder %s16, 0
      %p141 = por %p139, %p140
      %p142 = scmp.ne.s32.totalorder %s134, %s136
      %p143 = scmp.eq.s32.totalorder %s21, 1
      %p144 = por %p142, %p143
      %p145 = scmp.ne.s32.totalorder %s136, %s137
      %p146 = scmp.eq.s32.totalorder %s21, 0
      %p147 = por %p145, %p146
      %p148 = scmp.ne.s32.totalorder %s136, %s137
      %p149 = scmp.eq.s32.totalorder %s22, 1
      %p150 = por %p148, %p149
      %p152 = scmp.ne.s32.totalorder %s137, %s151
      %p153 = scmp.eq.s32.totalorder %s22, 0
      %p154 = por %p152, %p153
      %s156 = sadd.s32 %s155, 1
      %p159 = scmp.eq.s32.totalorder %s16, 1
      %p160 = scmp.ne.s32.totalorder %s155, %s157
      %p161 = scmp.eq.s32.totalorder %s16, 0
      %p162 = por %p160, %p161
      %p163 = scmp.ne.s32.totalorder %s155, %s157
      %p164 = scmp.eq.s32.totalorder %s21, 1
      %p165 = por %p163, %p164
      %p166 = scmp.ne.s32.totalorder %s157, %s158
      %p167 = scmp.eq.s32.totalorder %s21, 0
      %p168 = por %p166, %p167
      %p169 = scmp.ne.s32.totalorder %s157, %s158
      %p170 = scmp.eq.s32.totalorder %s22, 1
      %p171 = por %p169, %p170
      %p173 = scmp.ne.s32.totalorder %s158, %s172
      %p174 = scmp.eq.s32.totalorder %s22, 0
      %p175 = por %p173, %p174
      %s176 = ssub.s32 %s16, %s23
      %p177 = scmp.eq.s32.totalorder %s176, 0
      %s179 = sadd.s32 %s178, 1
      %s180 = scalar_select %p177, %s178, %s179
      %p183 = pneg %p177
      %p184 = scmp.eq.s32.totalorder %s16, 1
      %p185 = por %p183, %p184
      %p186 = scmp.ne.s32.totalorder %s178, %s181
      %p187 = scmp.eq.s32.totalorder %s16, 0
      %p188 = por %p186, %p187
      %p189 = scmp.ne.s32.totalorder %s178, %s181
      %p190 = scmp.eq.s32.totalorder %s21, 1
      %p191 = por %p189, %p190
      %p192 = scmp.ne.s32.totalorder %s181, %s182
      %p193 = scmp.eq.s32.totalorder %s21, 0
      %p194 = por %p192, %p193
      %p195 = scmp.ne.s32.totalorder %s181, %s182
      %p196 = scmp.eq.s32.totalorder %s22, 1
      %p197 = por %p195, %p196
      %p199 = scmp.ne.s32.totalorder %s182, %s198
      %p200 = scmp.eq.s32.totalorder %s22, 0
      %p201 = por %p199, %p200
      %p202 = scmp.le.s32.totalorder 1, %s16
      %p203 = scmp.lt.s32.totalorder %s16, 3
      %p204 = pnand %p202, %p203
      %p205 = pneg %p204
      // Predicated region
      $region9: #{tpu_custom_call.1} parent=5 // pred_check
        _
      $region10: #{tpu_custom_call.1} parent=5 // pred_check_branch
        %207 = sbr.rel (%p204) target = $region12
      $region11: #{tpu_custom_call.1} parent=5 // pred_region
        %s208 = ssub.s32 %s16, 1
        // Predicated region
        $region13: #{tpu_custom_call.1} parent=11 // pred_check
          %p209 = pneg %p63
        $region14: #{tpu_custom_call.1} parent=11 // pred_check_branch
          %211 = sbr.rel (%p209) target = $region16
        $region15: #{tpu_custom_call.1} parent=11 // pred_region
          _
        $region16: #{tpu_custom_call.1} parent=11 // pred_fallthru
          _
        // Predicated region
        $region17: #{tpu_custom_call.1} parent=11 // pred_check
          %p212 = pneg %p84
        $region18: #{tpu_custom_call.1} parent=11 // pred_check_branch
          %214 = sbr.rel (%p212) target = $region20
        $region19: #{tpu_custom_call.1} parent=11 // pred_region
          _
        $region20: #{tpu_custom_call.1} parent=11 // pred_fallthru
          _
        // Predicated region
        $region21: #{tpu_custom_call.1} parent=11 // pred_check
          %p215 = pneg %p105
        $region22: #{tpu_custom_call.1} parent=11 // pred_check_branch
          %217 = sbr.rel (%p215) target = $region24
        $region23: #{tpu_custom_call.1} parent=11 // pred_region
          _
        $region24: #{tpu_custom_call.1} parent=11 // pred_fallthru
          _
        // Predicated region
        $region25: #{tpu_custom_call.1} parent=11 // pred_check
          %p218 = pneg %p126
        $region26: #{tpu_custom_call.1} parent=11 // pred_check_branch
          %220 = sbr.rel (%p218) target = $region28
        $region27: #{tpu_custom_call.1} parent=11 // pred_region
          _
        $region28: #{tpu_custom_call.1} parent=11 // pred_fallthru
          _
        // Predicated region
        $region29: #{tpu_custom_call.1} parent=11 // pred_check
          %p221 = pneg %p147
        $region30: #{tpu_custom_call.1} parent=11 // pred_check_branch
          %223 = sbr.rel (%p221) target = $region32
        $region31: #{tpu_custom_call.1} parent=11 // pred_region
          _
        $region32: #{tpu_custom_call.1} parent=11 // pred_fallthru
          _
        // Predicated region
        $region33: #{tpu_custom_call.1} parent=11 // pred_check
          %p224 = pneg %p168
        $region34: #{tpu_custom_call.1} parent=11 // pred_check_branch
          %226 = sbr.rel (%p224) target = $region36
        $region35: #{tpu_custom_call.1} parent=11 // pred_region
          _
        $region36: #{tpu_custom_call.1} parent=11 // pred_fallthru
          _
      $region12: #{tpu_custom_call.1} parent=5 // pred_fallthru
        _
      %p227 = scmp.lt.s32.totalorder %s16, 2
      // Predicated region
      $region37: #{tpu_custom_call.1} parent=5 // pred_check
        %p228 = pneg %p227
      $region38: #{tpu_custom_call.1} parent=5 // pred_check_branch
        %230 = sbr.rel (%p228) target = $region40
      $region39: #{tpu_custom_call.1} parent=5 // pred_region
        // Predicated region
        $region41: #{tpu_custom_call.1} parent=39 // pred_check
          %p231 = pneg %p36
        $region42: #{tpu_custom_call.1} parent=39 // pred_check_branch
          %233 = sbr.rel (%p231) target = $region44
        $region43: #{tpu_custom_call.1} parent=39 // pred_region
          %s234 = smul.u32 16, %s16
          %p235 = scmp.lt.s32.totalorder %s234, 31
          %s236 = scalar_select %p235, %s234, 31
          %s237 = smul.addr %s236, 8
          %s238 = scalar_lea.vmem %s0, %s237
          %s239 = smul.u32 16, %s16
        $region44: #{tpu_custom_call.1} parent=39 // pred_fallthru
          _
      $region40: #{tpu_custom_call.1} parent=5 // pred_fallthru
        _
      %p240 = scmp.le.s32.totalorder 1, %s16
      %p241 = scmp.lt.s32.totalorder %s16, 3
      %p242 = pnand %p240, %p241
      %p243 = pneg %p242
      // Predicated region
      $region45: #{tpu_custom_call.1} parent=5 // pred_check
        _
      $region46: #{tpu_custom_call.1} parent=5 // pred_check_branch
        %245 = sbr.rel (%p242) target = $region48
      $region47: #{tpu_custom_call.1} parent=5 // pred_region
        %s246 = ssub.s32 %s16, 1
        %s247 = smul.u32 16, %s21
        %p248 = scmp.lt.s32.totalorder %s247, 31
        %s249 = scalar_select %p248, %s247, 31
        %s250 = smul.addr %s249, 8
        %s251 = scalar_lea.vmem %s0, %s250
        %p252 = pneg %p42
        %p253 = pneg %p39
        %p254 = pneg %p63
        %p255 = pneg %p60
        %p256 = pneg %p84
        %p257 = pneg %p81
        %p258 = pneg %p105
        %p259 = pneg %p102
        %p260 = pneg %p126
        %p261 = pneg %p123
        %p262 = pneg %p147
        %p263 = pneg %p144
        %p264 = pneg %p168
        %p265 = pneg %p165
        %p266 = pneg %p194
        %p267 = pneg %p191
        %s268 = sand.u32 %s181, 1
        %s269 = scalar_lea.sflag [#allocation3], %s268
        %s270 = sand.u32 %s181, 1
        %s271 = smul.addr %s270, 256
        %s272 = scalar_lea.vmem [#allocation2], %s271
        %s273 = smul.u32 16, %s21
        %p274 = scmp.lt.s32.totalorder %s273, 31
        %s275 = scalar_select %p274, %s273, 31
        %s276 = smul.addr %s275, 8
        %s277 = scalar_lea.vmem %s0, %s276
        %s278 = smul.u32 16, %s21
        %s279 = smul.u32 16, %s21
        %v281 = vld [vmem:[%s277] sm:$0xff]
        %v282 = vld [vmem:[%s277 + $0x8] sm:$0xff]
        %v283 = vld [vmem:[%s277 + $0x10] sm:$0xff]
        %v284 = vld [vmem:[%s277 + $0x18] sm:$0xff]
        %v285 = vld [vmem:[%s277 + $0x20] sm:$0xff]
        %v286 = vld [vmem:[%s277 + $0x28] sm:$0xff]
        %v287 = vld [vmem:[%s277 + $0x30] sm:$0xff]
        %v288 = vld [vmem:[%s277 + $0x38] sm:$0xff]
        %v289 = vld [vmem:[%s277 + $0x40] sm:$0xff]
        %v290 = vld [vmem:[%s277 + $0x48] sm:$0xff]
        %v291 = vld [vmem:[%s277 + $0x50] sm:$0xff]
        %v292 = vld [vmem:[%s277 + $0x58] sm:$0xff]
        %v293 = vld [vmem:[%s277 + $0x60] sm:$0xff]
        %v294 = vld [vmem:[%s277 + $0x68] sm:$0xff]
        %v295 = vld [vmem:[%s277 + $0x70] sm:$0xff]
        %v296 = vld [vmem:[%s277 + $0x78] sm:$0xff]
        %v297 = vpack.c.bf16 %v282, %v281
        %v298 = vpack.c.bf16 %v284, %v283
        %v299 = vpack.c.bf16 %v286, %v285
        %v300 = vpack.c.bf16 %v288, %v287
        %v301 = vpack.c.bf16 %v290, %v289
        %v302 = vpack.c.bf16 %v292, %v291
        %v303 = vpack.c.bf16 %v294, %v293
        %v304 = vpack.c.bf16 %v296, %v295
        %v305 = vld [vmem:[%s1] sm:$0xf]
        %v306 = vld [vmem:[%s1 + $0x4] sm:$0xf]
        %v307 = vld [vmem:[%s1 + $0x8] sm:$0xf]
        %v308 = vld [vmem:[%s1 + $0xc] sm:$0xf]
        %v309 = vld [vmem:[%s2] sm:$0x1]
        %v311 = vlaneseq
        %v312 = vshrl.u32 %v311, 7
        %v313 = vsub.s32 0, %v312
        %v314 = vrot.slane %v309, %v313
        %v320 = vunpack.c.l.b16 %v305
        %v321 = vunpack.c.l.b16 %v306
        %v322 = vunpack.c.l.b16 %v307
        %v323 = vunpack.c.l.b16 %v308
        %v324 = vpack.c.b16 %v321, %v320
        %v325 = vpack.c.b16 %v323, %v322
        %vm328 = vcmask 261120
        %v330 = vsel %vm328, %v297, 0
        %v333 = vsel %vm328, %v298, 0
        %v336 = vsel %vm328, %v299, 0
        %v339 = vsel %vm328, %v300, 0
        %v342 = vsel %vm328, %v301, 0
        %v345 = vsel %vm328, %v302, 0
        %v348 = vsel %vm328, %v303, 0
        %v351 = vsel %vm328, %v304, 0
        %353 = vmatprep.subr.bf16.mxu0 0
        %354 = vmatpush1.bf16.msra.mxu0 0
        %355 = vmatprep.subr.bf16.mxu0 0
        %356 = vmatpush1.bf16.msra.mxu0 0
        %357 = vmatprep.subr.bf16.mxu0 0
        %358 = vmatpush1.bf16.msra.mxu0 0
        %359 = vmatprep.subr.bf16.mxu0 0
        %360 = vmatpush1.bf16.msra.mxu0 0
        %361 = vmatprep.subr.bf16.mxu0 0
        %362 = vmatpush1.bf16.msra.mxu0 0
        %363 = vmatprep.subr.bf16.mxu0 0
        %364 = vmatpush1.bf16.msra.mxu0 0
        %365 = vmatprep.subr.bf16.mxu0 0
        %366 = vmatpush1.bf16.msra.mxu0 %v325
        %367 = vmatprep.subr.bf16.mxu0 0
        %368 = vmatpush1.bf16.msra.mxu0 %v324
        %369 = vmatprep.subr.bf16.mxu0 0
        %370 = vmatpush2.bf16.msra.mxu0 0
        %371 = vmatprep.subr.bf16.mxu0 0
        %372 = vmatpush2.bf16.msra.mxu0 0
        %373 = vmatprep.subr.bf16.mxu0 0
        %374 = vmatpush2.bf16.msra.mxu0 0
        %375 = vmatprep.subr.bf16.mxu0 0
        %376 = vmatpush2.bf16.msra.mxu0 0
        %377 = vmatprep.subr.bf16.mxu0 0
        %378 = vmatpush2.bf16.msra.mxu0 0
        %379 = vmatprep.subr.bf16.mxu0 0
        %380 = vmatpush2.bf16.msra.mxu0 0
        %381 = vmatprep.subr.bf16.mxu0 0
        %382 = vmatpush2.bf16.msra.mxu0 0
        %383 = vmatprep.subr.bf16.mxu0 0
        %384 = vmatpush2.bf16.msra.mxu0 0
        %385 = vmatprep.mubr.bf16.mxu0 0
        %386 = vmatmul.mubr.bf16.gmra.mxu0 %v330
        %v387 = vpop.f32.mrf.mxu0
        %v388 = vadd.f32 %v314, %v387
        %v389 = vpop.f32.mrf.mxu0
        %v390 = vpop.f32.mrf.mxu0
        %v391 = vadd.f32 %v314, %v390
        %v392 = vpop.f32.mrf.mxu0
        %393 = vmatprep.mubr.bf16.mxu0 0
        %394 = vmatmul.mubr.bf16.gmra.mxu0 %v333
        %v395 = vpop.f32.mrf.mxu0
        %v396 = vadd.f32 %v314, %v395
        %v397 = vpop.f32.mrf.mxu0
        %v398 = vpop.f32.mrf.mxu0
        %v399 = vadd.f32 %v314, %v398
        %v400 = vpop.f32.mrf.mxu0
        %401 = vmatprep.mubr.bf16.mxu0 0
        %402 = vmatmul.mubr.bf16.gmra.mxu0 %v336
        %v403 = vpop.f32.mrf.mxu0
        %v404 = vadd.f32 %v314, %v403
        %v405 = vpop.f32.mrf.mxu0
        %v406 = vpop.f32.mrf.mxu0
        %v407 = vadd.f32 %v314, %v406
        %v408 = vpop.f32.mrf.mxu0
        %409 = vmatprep.mubr.bf16.mxu0 0
        %410 = vmatmul.mubr.bf16.gmra.mxu0 %v339
        %v411 = vpop.f32.mrf.mxu0
        %v412 = vadd.f32 %v314, %v411
        %v413 = vpop.f32.mrf.mxu0
        %v414 = vpop.f32.mrf.mxu0
        %v415 = vadd.f32 %v314, %v414
        %v416 = vpop.f32.mrf.mxu0
        %417 = vmatprep.mubr.bf16.mxu0 0
        %418 = vmatmul.mubr.bf16.gmra.mxu0 %v342
        %v419 = vpop.f32.mrf.mxu0
        %v420 = vadd.f32 %v314, %v419
        %v421 = vpop.f32.mrf.mxu0
        %v422 = vpop.f32.mrf.mxu0
        %v423 = vadd.f32 %v314, %v422
        %v424 = vpop.f32.mrf.mxu0
        %425 = vmatprep.mubr.bf16.mxu0 0
        %426 = vmatmul.mubr.bf16.gmra.mxu0 %v345
        %v427 = vpop.f32.mrf.mxu0
        %v428 = vadd.f32 %v314, %v427
        %v429 = vpop.f32.mrf.mxu0
        %v430 = vpop.f32.mrf.mxu0
        %v431 = vadd.f32 %v314, %v430
        %v432 = vpop.f32.mrf.mxu0
        %433 = vmatprep.mubr.bf16.mxu0 0
        %434 = vmatmul.mubr.bf16.gmra.mxu0 %v348
        %v435 = vpop.f32.mrf.mxu0
        %v436 = vadd.f32 %v314, %v435
        %v437 = vpop.f32.mrf.mxu0
        %v438 = vpop.f32.mrf.mxu0
        %v439 = vadd.f32 %v314, %v438
        %v440 = vpop.f32.mrf.mxu0
        %441 = vmatprep.mubr.bf16.mxu0 0
        %442 = vmatmul.mubr.bf16.gmra.mxu0 %v351
        %v443 = vpop.f32.mrf.mxu0
        %v444 = vadd.f32 %v314, %v443
        %v445 = vpop.f32.mrf.mxu0
        %v446 = vpop.f32.mrf.mxu0
        %v447 = vadd.f32 %v314, %v446
        %v448 = vpop.f32.mrf.mxu0
        %449 = vdwg.mxu0
        %v450 = vmul.f32 %v388, 0.2
        %v451 = vmul.f32 %v391, 0.2
        %v452 = vmul.f32 %v396, 0.2
        %v453 = vmul.f32 %v399, 0.2
        %v454 = vmul.f32 %v404, 0.2
        %v455 = vmul.f32 %v407, 0.2
        %v456 = vmul.f32 %v412, 0.2
        %v457 = vmul.f32 %v415, 0.2
        %v458 = vmul.f32 %v420, 0.2
        %v459 = vmul.f32 %v423, 0.2
        %v460 = vmul.f32 %v428, 0.2
        %v461 = vmul.f32 %v431, 0.2
        %v462 = vmul.f32 %v436, 0.2
        %v463 = vmul.f32 %v439, 0.2
        %v464 = vmul.f32 %v444, 0.2
        %v465 = vmul.f32 %v447, 0.2
        %v466 = vmax.f32 %v388, %v450
        %v467 = vmax.f32 %v391, %v451
        %v468 = vmax.f32 %v396, %v452
        %v469 = vmax.f32 %v399, %v453
        %v470 = vmax.f32 %v404, %v454
        %v471 = vmax.f32 %v407, %v455
        %v472 = vmax.f32 %v412, %v456
        %v473 = vmax.f32 %v415, %v457
        %v474 = vmax.f32 %v420, %v458
        %v475 = vmax.f32 %v423, %v459
        %v476 = vmax.f32 %v428, %v460
        %v477 = vmax.f32 %v431, %v461
        %v478 = vmax.f32 %v436, %v462
        %v479 = vmax.f32 %v439, %v463
        %v480 = vmax.f32 %v444, %v464
        %v481 = vmax.f32 %v447, %v465
        %v482 = vpack.c.bf16 %v467, %v466
        %v483 = vpack.c.bf16 %v469, %v468
        %v484 = vpack.c.bf16 %v471, %v470
        %v485 = vpack.c.bf16 %v473, %v472
        %v486 = vpack.c.bf16 %v475, %v474
        %v487 = vpack.c.bf16 %v477, %v476
        %v488 = vpack.c.bf16 %v479, %v478
        %v489 = vpack.c.bf16 %v481, %v480
        %v490 = vld [vmem:[%s3] sm:$0xf]
        %v491 = vld [vmem:[%s3 + $0x4] sm:$0xf]
        %v492 = vld [vmem:[%s3 + $0x8] sm:$0xf]
        %v493 = vld [vmem:[%s3 + $0xc] sm:$0xf]
        %v494 = vld [vmem:[%s3 + $0x10] sm:$0xf]
        %v495 = vld [vmem:[%s3 + $0x14] sm:$0xf]
        %v496 = vld [vmem:[%s3 + $0x18] sm:$0xf]
        %v497 = vld [vmem:[%s3 + $0x1c] sm:$0xf]
        %v498 = vld [vmem:[%s4] sm:$0x1]
        %v500 = vlaneseq
        %v501 = vshrl.u32 %v500, 7
        %v502 = vsub.s32 0, %v501
        %v503 = vrot.slane %v498, %v502
        %v513 = vunpack.c.l.b16 %v490
        %v514 = vunpack.c.l.b16 %v491
        %v515 = vunpack.c.l.b16 %v492
        %v516 = vunpack.c.l.b16 %v493
        %v517 = vunpack.c.l.b16 %v494
        %v518 = vunpack.c.l.b16 %v495
        %v519 = vunpack.c.l.b16 %v496
        %v520 = vunpack.c.l.b16 %v497
        %v521 = vpack.c.b16 %v514, %v513
        %v522 = vpack.c.b16 %v516, %v515
        %v523 = vpack.c.b16 %v518, %v517
        %v524 = vpack.c.b16 %v520, %v519
        %vm529 = vcmask 523264
        %v531 = vsel %vm529, %v482, 0
        %v534 = vsel %vm529, %v483, 0
        %v537 = vsel %vm529, %v484, 0
        %v540 = vsel %vm529, %v485, 0
        %v543 = vsel %vm529, %v486, 0
        %v546 = vsel %vm529, %v487, 0
        %v549 = vsel %vm529, %v488, 0
        %v552 = vsel %vm529, %v489, 0
        %554 = vmatprep.subr.bf16.mxu0 0
        %555 = vmatpush1.bf16.msra.mxu0 0
        %556 = vmatprep.subr.bf16.mxu0 0
        %557 = vmatpush1.bf16.msra.mxu0 0
        %558 = vmatprep.subr.bf16.mxu0 0
        %559 = vmatpush1.bf16.msra.mxu0 0
        %560 = vmatprep.subr.bf16.mxu0 0
        %561 = vmatpush1.bf16.msra.mxu0 0
        %562 = vmatprep.subr.bf16.mxu0 0
        %563 = vmatpush1.bf16.msra.mxu0 %v524
        %564 = vmatprep.subr.bf16.mxu0 0
        %565 = vmatpush1.bf16.msra.mxu0 %v523
        %566 = vmatprep.subr.bf16.mxu0 0
        %567 = vmatpush1.bf16.msra.mxu0 %v522
        %568 = vmatprep.subr.bf16.mxu0 0
        %569 = vmatpush1.bf16.msra.mxu0 %v521
        %570 = vmatprep.subr.bf16.mxu0 0
        %571 = vmatpush2.bf16.msra.mxu0 0
        %572 = vmatprep.subr.bf16.mxu0 0
        %573 = vmatpush2.bf16.msra.mxu0 0
        %574 = vmatprep.subr.bf16.mxu0 0
        %575 = vmatpush2.bf16.msra.mxu0 0
        %576 = vmatprep.subr.bf16.mxu0 0
        %577 = vmatpush2.bf16.msra.mxu0 0
        %578 = vmatprep.subr.bf16.mxu0 0
        %579 = vmatpush2.bf16.msra.mxu0 0
        %580 = vmatprep.subr.bf16.mxu0 0
        %581 = vmatpush2.bf16.msra.mxu0 0
        %582 = vmatprep.subr.bf16.mxu0 0
        %583 = vmatpush2.bf16.msra.mxu0 0
        %584 = vmatprep.subr.bf16.mxu0 0
        %585 = vmatpush2.bf16.msra.mxu0 0
        %586 = vmatprep.mubr.bf16.mxu0 0
        %587 = vmatmul.mubr.bf16.gmra.mxu0 %v531
        %v588 = vpop.f32.mrf.mxu0
        %v589 = vadd.f32 %v503, %v588
        %v590 = vpop.f32.mrf.mxu0
        %v591 = vpop.f32.mrf.mxu0
        %v592 = vadd.f32 %v503, %v591
        %v593 = vpop.f32.mrf.mxu0
        %594 = vmatprep.mubr.bf16.mxu0 0
        %595 = vmatmul.mubr.bf16.gmra.mxu0 %v534
        %v596 = vpop.f32.mrf.mxu0
        %v597 = vadd.f32 %v503, %v596
        %v598 = vpop.f32.mrf.mxu0
        %v599 = vpop.f32.mrf.mxu0
        %v600 = vadd.f32 %v503, %v599
        %v601 = vpop.f32.mrf.mxu0
        %602 = vmatprep.mubr.bf16.mxu0 0
        %603 = vmatmul.mubr.bf16.gmra.mxu0 %v537
        %v604 = vpop.f32.mrf.mxu0
        %v605 = vadd.f32 %v503, %v604
        %v606 = vpop.f32.mrf.mxu0
        %v607 = vpop.f32.mrf.mxu0
        %v608 = vadd.f32 %v503, %v607
        %v609 = vpop.f32.mrf.mxu0
        %610 = vmatprep.mubr.bf16.mxu0 0
        %611 = vmatmul.mubr.bf16.gmra.mxu0 %v540
        %v612 = vpop.f32.mrf.mxu0
        %v613 = vadd.f32 %v503, %v612
        %v614 = vpop.f32.mrf.mxu0
        %v615 = vpop.f32.mrf.mxu0
        %v616 = vadd.f32 %v503, %v615
        %v617 = vpop.f32.mrf.mxu0
        %618 = vmatprep.mubr.bf16.mxu0 0
        %619 = vmatmul.mubr.bf16.gmra.mxu0 %v543
        %v620 = vpop.f32.mrf.mxu0
        %v621 = vadd.f32 %v503, %v620
        %v622 = vpop.f32.mrf.mxu0
        %v623 = vpop.f32.mrf.mxu0
        %v624 = vadd.f32 %v503, %v623
        %v625 = vpop.f32.mrf.mxu0
        %626 = vmatprep.mubr.bf16.mxu0 0
        %627 = vmatmul.mubr.bf16.gmra.mxu0 %v546
        %v628 = vpop.f32.mrf.mxu0
        %v629 = vadd.f32 %v503, %v628
        %v630 = vpop.f32.mrf.mxu0
        %v631 = vpop.f32.mrf.mxu0
        %v632 = vadd.f32 %v503, %v631
        %v633 = vpop.f32.mrf.mxu0
        %634 = vmatprep.mubr.bf16.mxu0 0
        %635 = vmatmul.mubr.bf16.gmra.mxu0 %v549
        %v636 = vpop.f32.mrf.mxu0
        %v637 = vadd.f32 %v503, %v636
        %v638 = vpop.f32.mrf.mxu0
        %v639 = vpop.f32.mrf.mxu0
        %v640 = vadd.f32 %v503, %v639
        %v641 = vpop.f32.mrf.mxu0
        %642 = vmatprep.mubr.bf16.mxu0 0
        %643 = vmatmul.mubr.bf16.gmra.mxu0 %v552
        %v644 = vpop.f32.mrf.mxu0
        %v645 = vadd.f32 %v503, %v644
        %v646 = vpop.f32.mrf.mxu0
        %v647 = vpop.f32.mrf.mxu0
        %v648 = vadd.f32 %v503, %v647
        %v649 = vpop.f32.mrf.mxu0
        %650 = vdwg.mxu0
        %v651 = vmul.f32 %v589, 0.2
        %v652 = vmul.f32 %v592, 0.2
        %v653 = vmul.f32 %v597, 0.2
        %v654 = vmul.f32 %v600, 0.2
        %v655 = vmul.f32 %v605, 0.2
        %v656 = vmul.f32 %v608, 0.2
        %v657 = vmul.f32 %v613, 0.2
        %v658 = vmul.f32 %v616, 0.2
        %v659 = vmul.f32 %v621, 0.2
        %v660 = vmul.f32 %v624, 0.2
        %v661 = vmul.f32 %v629, 0.2
        %v662 = vmul.f32 %v632, 0.2
        %v663 = vmul.f32 %v637, 0.2
        %v664 = vmul.f32 %v640, 0.2
        %v665 = vmul.f32 %v645, 0.2
        %v666 = vmul.f32 %v648, 0.2
        %v667 = vmax.f32 %v589, %v651
        %v668 = vmax.f32 %v592, %v652
        %v669 = vmax.f32 %v597, %v653
        %v670 = vmax.f32 %v600, %v654
        %v671 = vmax.f32 %v605, %v655
        %v672 = vmax.f32 %v608, %v656
        %v673 = vmax.f32 %v613, %v657
        %v674 = vmax.f32 %v616, %v658
        %v675 = vmax.f32 %v621, %v659
        %v676 = vmax.f32 %v624, %v660
        %v677 = vmax.f32 %v629, %v661
        %v678 = vmax.f32 %v632, %v662
        %v679 = vmax.f32 %v637, %v663
        %v680 = vmax.f32 %v640, %v664
        %v681 = vmax.f32 %v645, %v665
        %v682 = vmax.f32 %v648, %v666
        %v683 = vpack.c.bf16 %v668, %v667
        %v684 = vpack.c.bf16 %v670, %v669
        %v685 = vpack.c.bf16 %v672, %v671
        %v686 = vpack.c.bf16 %v674, %v673
        %v687 = vpack.c.bf16 %v676, %v675
        %v688 = vpack.c.bf16 %v678, %v677
        %v689 = vpack.c.bf16 %v680, %v679
        %v690 = vpack.c.bf16 %v682, %v681
        %v691 = vld [vmem:[%s5] sm:$0xff]
        %v692 = vld [vmem:[%s5 + $0x8] sm:$0xff]
        %v693 = vld [vmem:[%s5 + $0x10] sm:$0xff]
        %v694 = vld [vmem:[%s5 + $0x18] sm:$0xff]
        %v695 = vld [vmem:[%s5 + $0x20] sm:$0xff]
        %v696 = vld [vmem:[%s5 + $0x28] sm:$0xff]
        %v697 = vld [vmem:[%s5 + $0x30] sm:$0xff]
        %v698 = vld [vmem:[%s5 + $0x38] sm:$0xff]
        %v699 = vld [vmem:[%s5 + $0x40] sm:$0xff]
        %v700 = vld [vmem:[%s5 + $0x48] sm:$0xff]
        %v701 = vld [vmem:[%s5 + $0x50] sm:$0xff]
        %v702 = vld [vmem:[%s5 + $0x58] sm:$0xff]
        %v703 = vld [vmem:[%s5 + $0x60] sm:$0xff]
        %v704 = vld [vmem:[%s5 + $0x68] sm:$0xff]
        %v705 = vld [vmem:[%s5 + $0x70] sm:$0xff]
        %v706 = vld [vmem:[%s5 + $0x78] sm:$0xff]
        %v707 = vld [vmem:[%s6] sm:$0x3]
        %v709 = vlaneseq
        %v710 = vshrl.u32 %v709, 7
        %v711 = vsub.s32 0, %v710
        %v712 = vrot.slane %v707, %v711
        %v713 = vlaneseq
        %v714 = vshrl.u32 %v713, 7
        %v715 = vsub.s32 1, %v714
        %v716 = vrot.slane %v707, %v715
        %v735 = vunpack.c.l.b16 %v691
        %v736 = vunpack.c.h.b16 %v691
        %v737 = vunpack.c.l.b16 %v692
        %v738 = vunpack.c.h.b16 %v692
        %v739 = vunpack.c.l.b16 %v693
        %v740 = vunpack.c.h.b16 %v693
        %v741 = vunpack.c.l.b16 %v694
        %v742 = vunpack.c.h.b16 %v694
        %v743 = vunpack.c.l.b16 %v695
        %v744 = vunpack.c.h.b16 %v695
        %v745 = vunpack.c.l.b16 %v696
        %v746 = vunpack.c.h.b16 %v696
        %v747 = vunpack.c.l.b16 %v697
        %v748 = vunpack.c.h.b16 %v697
        %v749 = vunpack.c.l.b16 %v698
        %v750 = vunpack.c.h.b16 %v698
        %v751 = vunpack.c.l.b16 %v699
        %v752 = vunpack.c.h.b16 %v699
        %v753 = vunpack.c.l.b16 %v700
        %v754 = vunpack.c.h.b16 %v700
        %v755 = vunpack.c.l.b16 %v701
        %v756 = vunpack.c.h.b16 %v701
        %v757 = vunpack.c.l.b16 %v702
        %v758 = vunpack.c.h.b16 %v702
        %v759 = vunpack.c.l.b16 %v703
        %v760 = vunpack.c.h.b16 %v703
        %v761 = vunpack.c.l.b16 %v704
        %v762 = vunpack.c.h.b16 %v704
        %v763 = vunpack.c.l.b16 %v705
        %v764 = vunpack.c.h.b16 %v705
        %v765 = vunpack.c.l.b16 %v706
        %v766 = vunpack.c.h.b16 %v706
        %v767 = vpack.c.b16 %v737, %v735
        %v768 = vpack.c.b16 %v738, %v736
        %v769 = vpack.c.b16 %v741, %v739
        %v770 = vpack.c.b16 %v742, %v740
        %v771 = vpack.c.b16 %v745, %v743
        %v772 = vpack.c.b16 %v746, %v744
        %v773 = vpack.c.b16 %v749, %v747
        %v774 = vpack.c.b16 %v750, %v748
        %v775 = vpack.c.b16 %v753, %v751
        %v776 = vpack.c.b16 %v754, %v752
        %v777 = vpack.c.b16 %v757, %v755
        %v778 = vpack.c.b16 %v758, %v756
        %v779 = vpack.c.b16 %v761, %v759
        %v780 = vpack.c.b16 %v762, %v760
        %v781 = vpack.c.b16 %v765, %v763
        %v782 = vpack.c.b16 %v766, %v764
        %799 = vmatprep.subr.bf16.mxu0 %v782
        %800 = vmatpush1.bf16.msra.mxu0 %v781
        %801 = vmatprep.subr.bf16.mxu0 %v780
        %802 = vmatpush1.bf16.msra.mxu0 %v779
        %803 = vmatprep.subr.bf16.mxu0 %v778
        %804 = vmatpush1.bf16.msra.mxu0 %v777
        %805 = vmatprep.subr.bf16.mxu0 %v776
        %806 = vmatpush1.bf16.msra.mxu0 %v775
        %807 = vmatprep.subr.bf16.mxu0 %v774
        %808 = vmatpush1.bf16.msra.mxu0 %v773
        %809 = vmatprep.subr.bf16.mxu0 %v772
        %810 = vmatpush1.bf16.msra.mxu0 %v771
        %811 = vmatprep.subr.bf16.mxu0 %v770
        %812 = vmatpush1.bf16.msra.mxu0 %v769
        %813 = vmatprep.subr.bf16.mxu0 %v768
        %814 = vmatpush1.bf16.msra.mxu0 %v767
        %815 = vmatprep.subr.bf16.mxu0 0
        %816 = vmatpush2.bf16.msra.mxu0 0
        %817 = vmatprep.subr.bf16.mxu0 0
        %818 = vmatpush2.bf16.msra.mxu0 0
        %819 = vmatprep.subr.bf16.mxu0 0
        %820 = vmatpush2.bf16.msra.mxu0 0
        %821 = vmatprep.subr.bf16.mxu0 0
        %822 = vmatpush2.bf16.msra.mxu0 0
        %823 = vmatprep.subr.bf16.mxu0 0
        %824 = vmatpush2.bf16.msra.mxu0 0
        %825 = vmatprep.subr.bf16.mxu0 0
        %826 = vmatpush2.bf16.msra.mxu0 0
        %827 = vmatprep.subr.bf16.mxu0 0
        %828 = vmatpush2.bf16.msra.mxu0 0
        %829 = vmatprep.subr.bf16.mxu0 0
        %830 = vmatpush2.bf16.msra.mxu0 0
        %831 = vmatprep.mubr.bf16.mxu0 0
        %832 = vmatmul.mubr.bf16.gmra.mxu0 %v683
        %v833 = vpop.f32.mrf.mxu0
        %v834 = vadd.f32 %v712, %v833
        %v835 = vpop.f32.mrf.mxu0
        %v836 = vadd.f32 %v716, %v835
        %v837 = vpop.f32.mrf.mxu0
        %v838 = vadd.f32 %v712, %v837
        %v839 = vpop.f32.mrf.mxu0
        %v840 = vadd.f32 %v716, %v839
        %841 = vmatprep.mubr.bf16.mxu0 0
        %842 = vmatmul.mubr.bf16.gmra.mxu0 %v684
        %v843 = vpop.f32.mrf.mxu0
        %v844 = vadd.f32 %v712, %v843
        %v845 = vpop.f32.mrf.mxu0
        %v846 = vadd.f32 %v716, %v845
        %v847 = vpop.f32.mrf.mxu0
        %v848 = vadd.f32 %v712, %v847
        %v849 = vpop.f32.mrf.mxu0
        %v850 = vadd.f32 %v716, %v849
        %851 = vmatprep.mubr.bf16.mxu0 0
        %852 = vmatmul.mubr.bf16.gmra.mxu0 %v685
        %v853 = vpop.f32.mrf.mxu0
        %v854 = vadd.f32 %v712, %v853
        %v855 = vpop.f32.mrf.mxu0
        %v856 = vadd.f32 %v716, %v855
        %v857 = vpop.f32.mrf.mxu0
        %v858 = vadd.f32 %v712, %v857
        %v859 = vpop.f32.mrf.mxu0
        %v860 = vadd.f32 %v716, %v859
        %861 = vmatprep.mubr.bf16.mxu0 0
        %862 = vmatmul.mubr.bf16.gmra.mxu0 %v686
        %v863 = vpop.f32.mrf.mxu0
        %v864 = vadd.f32 %v712, %v863
        %v865 = vpop.f32.mrf.mxu0
        %v866 = vadd.f32 %v716, %v865
        %v867 = vpop.f32.mrf.mxu0
        %v868 = vadd.f32 %v712, %v867
        %v869 = vpop.f32.mrf.mxu0
        %v870 = vadd.f32 %v716, %v869
        %871 = vmatprep.mubr.bf16.mxu0 0
        %872 = vmatmul.mubr.bf16.gmra.mxu0 %v687
        %v873 = vpop.f32.mrf.mxu0
        %v874 = vadd.f32 %v712, %v873
        %v875 = vpop.f32.mrf.mxu0
        %v876 = vadd.f32 %v716, %v875
        %v877 = vpop.f32.mrf.mxu0
        %v878 = vadd.f32 %v712, %v877
        %v879 = vpop.f32.mrf.mxu0
        %v880 = vadd.f32 %v716, %v879
        %881 = vmatprep.mubr.bf16.mxu0 0
        %882 = vmatmul.mubr.bf16.gmra.mxu0 %v688
        %v883 = vpop.f32.mrf.mxu0
        %v884 = vadd.f32 %v712, %v883
        %v885 = vpop.f32.mrf.mxu0
        %v886 = vadd.f32 %v716, %v885
        %v887 = vpop.f32.mrf.mxu0
        %v888 = vadd.f32 %v712, %v887
        %v889 = vpop.f32.mrf.mxu0
        %v890 = vadd.f32 %v716, %v889
        %891 = vmatprep.mubr.bf16.mxu0 0
        %892 = vmatmul.mubr.bf16.gmra.mxu0 %v689
        %v893 = vpop.f32.mrf.mxu0
        %v894 = vadd.f32 %v712, %v893
        %v895 = vpop.f32.mrf.mxu0
        %v896 = vadd.f32 %v716, %v895
        %v897 = vpop.f32.mrf.mxu0
        %v898 = vadd.f32 %v712, %v897
        %v899 = vpop.f32.mrf.mxu0
        %v900 = vadd.f32 %v716, %v899
        %901 = vmatprep.mubr.bf16.mxu0 0
        %902 = vmatmul.mubr.bf16.gmra.mxu0 %v690
        %v903 = vpop.f32.mrf.mxu0
        %v904 = vadd.f32 %v712, %v903
        %v905 = vpop.f32.mrf.mxu0
        %v906 = vadd.f32 %v716, %v905
        %v907 = vpop.f32.mrf.mxu0
        %v908 = vadd.f32 %v712, %v907
        %v909 = vpop.f32.mrf.mxu0
        %v910 = vadd.f32 %v716, %v909
        %911 = vdwg.mxu0
        %v912 = vtanh.pop %v834
        %v913 = vtanh.pop %v836
        %v914 = vtanh.pop %v838
        %v915 = vtanh.pop %v840
        %v916 = vtanh.pop %v844
        %v917 = vtanh.pop %v846
        %v918 = vtanh.pop %v848
        %v919 = vtanh.pop %v850
        %v920 = vtanh.pop %v854
        %v921 = vtanh.pop %v856
        %v922 = vtanh.pop %v858
        %v923 = vtanh.pop %v860
        %v924 = vtanh.pop %v864
        %v925 = vtanh.pop %v866
        %v926 = vtanh.pop %v868
        %v927 = vtanh.pop %v870
        %v928 = vtanh.pop %v874
        %v929 = vtanh.pop %v876
        %v930 = vtanh.pop %v878
        %v931 = vtanh.pop %v880
        %v932 = vtanh.pop %v884
        %v933 = vtanh.pop %v886
        %v934 = vtanh.pop %v888
        %v935 = vtanh.pop %v890
        %v936 = vtanh.pop %v894
        %v937 = vtanh.pop %v896
        %v938 = vtanh.pop %v898
        %v939 = vtanh.pop %v900
        %v940 = vtanh.pop %v904
        %v941 = vtanh.pop %v906
        %v942 = vtanh.pop %v908
        %v943 = vtanh.pop %v910
        %944 = vst [vmem:[%s272] sm:$0xff] %v912
        %945 = vst [vmem:[%s272 + $0x8] sm:$0xff] %v913
        %946 = vst [vmem:[%s272 + $0x10] sm:$0xff] %v914
        %947 = vst [vmem:[%s272 + $0x18] sm:$0xff] %v915
        %948 = vst [vmem:[%s272 + $0x20] sm:$0xff] %v916
        %949 = vst [vmem:[%s272 + $0x28] sm:$0xff] %v917
        %950 = vst [vmem:[%s272 + $0x30] sm:$0xff] %v918
        %951 = vst [vmem:[%s272 + $0x38] sm:$0xff] %v919
        %952 = vst [vmem:[%s272 + $0x40] sm:$0xff] %v920
        %953 = vst [vmem:[%s272 + $0x48] sm:$0xff] %v921
        %954 = vst [vmem:[%s272 + $0x50] sm:$0xff] %v922
        %955 = vst [vmem:[%s272 + $0x58] sm:$0xff] %v923
        %956 = vst [vmem:[%s272 + $0x60] sm:$0xff] %v924
        %957 = vst [vmem:[%s272 + $0x68] sm:$0xff] %v925
        %958 = vst [vmem:[%s272 + $0x70] sm:$0xff] %v926
        %959 = vst [vmem:[%s272 + $0x78] sm:$0xff] %v927
        %960 = vst [vmem:[%s272 + $0x80] sm:$0xff] %v928
        %961 = vst [vmem:[%s272 + $0x88] sm:$0xff] %v929
        %962 = vst [vmem:[%s272 + $0x90] sm:$0xff] %v930
        %963 = vst [vmem:[%s272 + $0x98] sm:$0xff] %v931
        %964 = vst [vmem:[%s272 + $0xa0] sm:$0xff] %v932
        %965 = vst [vmem:[%s272 + $0xa8] sm:$0xff] %v933
        %966 = vst [vmem:[%s272 + $0xb0] sm:$0xff] %v934
        %967 = vst [vmem:[%s272 + $0xb8] sm:$0xff] %v935
        %968 = vst [vmem:[%s272 + $0xc0] sm:$0xff] %v936
        %969 = vst [vmem:[%s272 + $0xc8] sm:$0xff] %v937
        %970 = vst [vmem:[%s272 + $0xd0] sm:$0xff] %v938
        %971 = vst [vmem:[%s272 + $0xd8] sm:$0xff] %v939
        %972 = vst [vmem:[%s272 + $0xe0] sm:$0xff] %v940
        %973 = vst [vmem:[%s272 + $0xe8] sm:$0xff] %v941
        %974 = vst [vmem:[%s272 + $0xf0] sm:$0xff] %v942
        %975 = vst [vmem:[%s272 + $0xf8] sm:$0xff] %v943
        %s976 = sand.u32 %s181, 1
        %s977 = scalar_lea.sflag [#allocation3], %s976
        %s978 = sand.u32 %s181, 1
        %s979 = smul.addr %s978, 256
        %s980 = scalar_lea.vmem [#allocation2], %s979
        // Predicated region
        $region49: #{tpu_custom_call.1} parent=47 // pred_check
          %p981 = pneg %p191
        $region50: #{tpu_custom_call.1} parent=47 // pred_check_branch
          %983 = sbr.rel (%p981) target = $region52
        $region51: #{tpu_custom_call.1} parent=47 // pred_region
          %s984 = smul.u32 16, %s21
          %s986 = ssub.s32 4096, 4096
          %987 = vsyncadd %s977, %s986
          %s988 = smul.addr %s984, 2
          %s989 = smul.addr %s988, 128
          %s990 = scalar_lea.hbm %s7, %s989
          %s991 = sshll.u32 %s980, 4
          %s992 = int_to_ptr.vmem [resolvable:$true] %s991
          %997 = dma.vmem_to_hbm [thread:$0]  %s992, 4096, %s990, %s977, 256, 256, 16
        $region52: #{tpu_custom_call.1} parent=47 // pred_fallthru
          _
      $region48: #{tpu_custom_call.1} parent=5 // pred_fallthru
        _
      %p998 = scmp.le.s32.totalorder 2, %s16
      // Predicated region
      $region53: #{tpu_custom_call.1} parent=5 // pred_check
        %p999 = pneg %p998
      $region54: #{tpu_custom_call.1} parent=5 // pred_check_branch
        %1001 = sbr.rel (%p999) target = $region56
      $region55: #{tpu_custom_call.1} parent=5 // pred_region
        %s1002 = ssub.s32 %s16, 2
        // Predicated region
        $region57: #{tpu_custom_call.1} parent=55 // pred_check
          %p1003 = pneg %p197
        $region58: #{tpu_custom_call.1} parent=55 // pred_check_branch
          %1005 = sbr.rel (%p1003) target = $region60
        $region59: #{tpu_custom_call.1} parent=55 // pred_region
          %s1006 = sand.u32 %s182, 1
          %s1007 = scalar_lea.sflag [#allocation3], %s1006
          %s1008 = sand.u32 %s182, 1
          %s1009 = smul.addr %s1008, 256
          %s1010 = scalar_lea.vmem [#allocation2], %s1009
          %1011 = dma.done %s1007, 4096
        $region60: #{tpu_custom_call.1} parent=55 // pred_fallthru
          _
      $region56: #{tpu_custom_call.1} parent=5 // pred_fallthru
        _
    $region6: #{tpu_custom_call.1} parent=1 // loop_footer
      %s20 = sadd.s32 1, %s16
    $region7: #{tpu_custom_call.1} parent=1 // loop_footer_branch
      %15 = sbr.rel target = $region3
    $region8: #{tpu_custom_call.1} parent=1 // loop_exit
      _
    %1012 = vsyncpa [#allocation3], 1
    %s1013 = scalar_lea.sflag [#allocation3], 1
    %1014 = vsyncpa %s1013, 1

</llo_original>
